<compile_context>
chip_gen: v7x
topology: tpu7x:2x2x1
jax: 0.10.0
libtpu: 0.0.40
codegen_flags: <defaults>
</compile_context>

<pallas_src>
import functools

import jax
import jax.numpy as jnp
from jax.experimental import pallas as pl
from jax.experimental.pallas import tpu as pltpu

MIN_NORM = 1e-15          # PoincareBall.min_norm
BALL_EPS_F32 = 4e-3       # PoincareBall.eps[torch.float32]


def _round_up(a, b):
    return (a + b - 1) // b * b


def _artanh(x):
    # clamped artanh as in the PoincareBall implementation
    x = jnp.clip(x, -1.0 + 1e-7, 1.0 - 1e-7)
    return 0.5 * jnp.log((1.0 + x) / (1.0 - x))


# --------------------------- kernel 1: logmap0 -------------------------------
def logmap0_kernel(x_ref, o_ref, *, c):
    sqrt_c = c ** 0.5
    x = x_ref[...].astype(jnp.float32)                                # [TM, Dp]
    x_sq = jnp.sum(x * x, axis=-1, keepdims=True)
    # max(norm, MIN_NORM) == sqrt(max(norm^2, MIN_NORM^2))
    x_norm = jnp.sqrt(jnp.maximum(x_sq, MIN_NORM * MIN_NORM))
    scn = sqrt_c * x_norm
    scale = _artanh(scn) / scn
    o_ref[...] = (scale * x).astype(o_ref.dtype)


# ------------------ kernel 2: adj @ x_tan + expmap0 + proj --------------------
def agg_kernel(adj_ref, xt_ref, o_ref, acc_ref, *, c, tk, xt_resident):
    k = pl.program_id(1)

    @pl.when(k == 0)
    def _():
        acc_ref[...] = jnp.zeros_like(acc_ref)

    if xt_resident:
        # x_tan is fully VMEM-resident; slice the k-th contraction chunk.
        start = pl.multiple_of(k * tk, tk)
        xt = xt_ref[pl.ds(start, tk), :]
    else:
        xt = xt_ref[...]

    # bf16 x bf16 -> f32 accumulate on the MXU.
    acc_ref[...] += jnp.dot(adj_ref[...], xt,
                            preferred_element_type=jnp.float32)

    @pl.when(k == pl.num_programs(1) - 1)
    def _():
        sqrt_c = c ** 0.5
        support = acc_ref[...]                                        # [TM, Dp]

        # expmap0(support, c): gamma = tanh(sqrt_c*||s||) / (sqrt_c*||s||) * s
        s_sq = jnp.sum(support * support, axis=-1, keepdims=True)
        s_norm = jnp.sqrt(jnp.maximum(s_sq, MIN_NORM * MIN_NORM))
        scn = sqrt_c * s_norm
        t = jnp.tanh(scn)

        # proj(gamma, c): ||gamma|| == t / sqrt_c algebraically, so the clip
        # factor is min(1, maxnorm/||gamma||) = min(1, (1 - eps) / t).
        # (Zero / padded rows: t ~ tanh(sqrt_c*MIN_NORM) > 0 -> factor 1.)
        clip = jnp.minimum(jnp.float32(1.0), (1.0 - BALL_EPS_F32) / t)
        o_ref[...] = (support * ((t / scn) * clip)).astype(o_ref.dtype)


# --------------------------------- wrapper -----------------------------------
def _pick_tiles(n):
    """Return (Npad, TM, TK): Npad multiple of both; no 128-tile fallback."""
    npad = _round_up(max(n, 1), 128)
    if npad <= 512:
        tm = 128            # >=2 row tiles once Npad >= 256 (v7x megacore)
        tk = npad           # single contraction step
    else:
        tm = 256
        tk = 512
        npad = _round_up(npad, 512)   # thin zero padding beats tiny tiles
    return npad, tm, tk


def hyp_agg(x, adj, c=1.0):
    """HypAgg forward (use_att=False). x: [N, D], adj: [N, N] dense."""
    N, D = x.shape
    assert adj.shape == (N, N)

    Npad, TM, TK = _pick_tiles(N)
    Dpad = _round_up(max(D, 1), 128)

    # bf16 adjacency stream (dominant N^2 HBM traffic); cast fused into the
    # pad so the copy writes half the bytes, and skipped entirely if unneeded.
    adj_b = adj.astype(jnp.bfloat16)
    if Npad != N:
        adj_b = jnp.pad(adj_b, ((0, Npad - N), (0, Npad - N)))

    xp = x.astype(jnp.float32)
    if (Npad, Dpad) != (N, D):
        xp = jnp.pad(xp, ((0, Npad - N), (0, Dpad - D)))

    # ---- stage 1: x_tangent = logmap0(x, c), f32 math, bf16 output ----------
    x_tan = pl.pallas_call(
        functools.partial(logmap0_kernel, c=float(c)),
        out_shape=jax.ShapeDtypeStruct((Npad, Dpad), jnp.bfloat16),
        grid=(Npad // TM,),
        in_specs=[pl.BlockSpec((TM, Dpad), lambda i: (i, 0))],
        out_specs=pl.BlockSpec((TM, Dpad), lambda i: (i, 0)),
        compiler_params=pltpu.CompilerParams(
            dimension_semantics=("parallel",)),
    )(xp)

    # ---- stage 2: tiled adj @ x_tan with fused expmap0 + proj epilogue ------
    # Keep x_tan VMEM-resident (one DMA total) when it fits an ~8 MiB budget
    # (counted twice for buffering; conservative for v7x's 64 MiB VMEM).
    xt_bytes_resident = 2 * Npad * Dpad * 2
    xt_resident = xt_bytes_resident <= (8 << 20)
    if xt_resident:
        xt_spec = pl.BlockSpec((Npad, Dpad), lambda i, k: (0, 0))
    else:
        xt_spec = pl.BlockSpec((TK, Dpad), lambda i, k: (k, 0))

    out_itemsize = jnp.dtype(x.dtype).itemsize
    vmem_need = (2 * TM * TK * 2                                   # adj tiles
                 + (xt_bytes_resident if xt_resident
                    else 2 * TK * Dpad * 2)                        # x_tan
                 + 2 * TM * Dpad * out_itemsize                    # out tiles
                 + TM * Dpad * 4)                                  # accumulator
    vmem_limit = int(min(max(vmem_need + (4 << 20), 32 << 20), 48 << 20))

    out_pad = pl.pallas_call(
        functools.partial(agg_kernel, c=float(c), tk=TK,
                          xt_resident=xt_resident),
        out_shape=jax.ShapeDtypeStruct((Npad, Dpad), x.dtype),
        grid=(Npad // TM, Npad // TK),
        in_specs=[
            pl.BlockSpec((TM, TK), lambda i, k: (i, k)),   # adj tile (streamed)
            xt_spec,                                        # x_tan (bf16)
        ],
        out_specs=pl.BlockSpec((TM, Dpad), lambda i, k: (i, 0)),
        scratch_shapes=[pltpu.VMEM((TM, Dpad), jnp.float32)],
        compiler_params=pltpu.CompilerParams(
            dimension_semantics=("parallel", "arbitrary"),
            vmem_limit_bytes=vmem_limit),
    )(adj_b, x_tan)

    if (Npad, Dpad) != (N, D):
        return out_pad[:N, :D]
    return out_pad


# ----------------------------- pure-JAX references ----------------------------
def _logmap0_ref(x, c):
    sqrt_c = c ** 0.5
    x_norm = jnp.maximum(jnp.linalg.norm(x, axis=-1, keepdims=True), MIN_NORM)
    return _artanh(sqrt_c * x_norm) / (sqrt_c * x_norm) * x


def _exp_proj_ref(support, c):
    sqrt_c = c ** 0.5
    s_norm = jnp.maximum(jnp.linalg.norm(support, axis=-1, keepdims=True),
                         MIN_NORM)
    gamma = jnp.tanh(sqrt_c * s_norm) * support / (sqrt_c * s_norm)
    g_norm = jnp.maximum(jnp.linalg.norm(gamma, axis=-1, keepdims=True),
                         MIN_NORM)
    maxnorm = (1.0 - BALL_EPS_F32) / sqrt_c
    return jnp.where(g_norm > maxnorm, gamma / g_norm * maxnorm, gamma)


def hyp_agg_ref(x, adj, c=1.0):
    """Full-f32 reference."""
    x_tan = _logmap0_ref(x.astype(jnp.float32), c)
    support = adj.astype(jnp.float32) @ x_tan
    return _exp_proj_ref(support, c)


def hyp_agg_ref_matched(x, adj, c=1.0):
    """Reference with the kernel's storage precision: bf16 matmul operands,
    exact f32 accumulation (what the MXU does)."""
    x_tan = _logmap0_ref(x.astype(jnp.float32), c).astype(jnp.bfloat16)
    support = jnp.dot(adj.astype(jnp.bfloat16).astype(jnp.float32),
                      x_tan.astype(jnp.float32),
                      precision=jax.lax.Precision.HIGHEST)
    return _exp_proj_ref(support, c)


if __name__ == "__main__":
    key = jax.random.PRNGKey(0)
    k1, k2 = jax.random.split(key)

    N, D = 16, 32      # nodes, in_features
    c = 1.0

    # points inside the Poincare ball (small norms)
    x = 0.1 * jax.random.normal(k1, (N, D), dtype=jnp.float32)

    # dense, row-normalized adjacency (self-loops + random neighbors)
    a = (jax.random.uniform(k2, (N, N)) > 0.7).astype(jnp.float32)
    a = a + jnp.eye(N, dtype=jnp.float32)
    adj = a / jnp.sum(a, axis=-1, keepdims=True)

    out = jax.block_until_ready(hyp_agg(x, adj, c=c))
    assert out.shape == (N, D)

    # Tight check against the precision-matched reference (bf16 operands,
    # f32 accumulation), loose check against the full-f32 reference.
    ref_m = hyp_agg_ref_matched(x, adj, c=c)
    assert jnp.allclose(out, ref_m, atol=1e-3, rtol=1e-3), \
        "mismatch vs precision-matched reference"

    ref_f = hyp_agg_ref(x, adj, c=c)
    assert jnp.allclose(out, ref_f, atol=5e-3, rtol=5e-3), \
        "mismatch vs f32 reference"

    print("KERNEL_OK")
</pallas_src>

<mosaic_0001>
module attributes {stable_mosaic.version = 11 : i64} {
  func.func @logmap0_kernel(%arg0: i32, %arg1: memref<128x128xf32, #tpu.memory_space<vmem>>, %arg2: memref<128x128xbf16, #tpu.memory_space<vmem>>) attributes {dimension_semantics = [#tpu.dimension_semantics<parallel>], iteration_bounds = array<i64: 1>, scalar_prefetch = 0 : i64, scratch_operands = 0 : i64, tpu.core_type = #tpu.core_type<tc>, window_params = [{transform_indices = @transform_0, window_bounds = array<i64: 128, 128>}, {transform_indices = @transform_1, window_bounds = array<i64: 128, 128>}]} {
    %c0 = arith.constant 0 : index
    %c0_0 = arith.constant 0 : index
    %0 = vector.load %arg1[%c0, %c0_0] : memref<128x128xf32, #tpu.memory_space<vmem>>, vector<128x128xf32>
    %1 = arith.mulf %0, %0 : vector<128x128xf32>
    %cst = arith.constant dense<0.000000e+00> : vector<128xf32>
    %2 = vector.multi_reduction <add>, %1, %cst [1] : vector<128x128xf32> to vector<128xf32>
    %3 = vector.shape_cast %2 : vector<128xf32> to vector<128x1xf32>
    %cst_1 = arith.constant 1.000000e-30 : f32
    %4 = vector.broadcast %cst_1 : f32 to vector<128x1xf32>
    %5 = arith.maximumf %3, %4 : vector<128x1xf32>
    %6 = math.sqrt %5 : vector<128x1xf32>
    %cst_2 = arith.constant 1.000000e+00 : f32
    %7 = vector.broadcast %cst_2 : f32 to vector<128x1xf32>
    %8 = arith.mulf %7, %6 : vector<128x1xf32>
    %cst_3 = arith.constant -0.99999988 : f32
    %cst_4 = arith.constant 0.99999988 : f32
    %9 = vector.broadcast %cst_3 : f32 to vector<128x1xf32>
    %10 = arith.maximumf %9, %8 : vector<128x1xf32>
    %11 = vector.broadcast %cst_4 : f32 to vector<128x1xf32>
    %12 = arith.minimumf %11, %10 : vector<128x1xf32>
    %cst_5 = arith.constant 1.000000e+00 : f32
    %13 = vector.broadcast %cst_5 : f32 to vector<128x1xf32>
    %14 = arith.addf %13, %12 : vector<128x1xf32>
    %cst_6 = arith.constant 1.000000e+00 : f32
    %15 = vector.broadcast %cst_6 : f32 to vector<128x1xf32>
    %16 = arith.subf %15, %12 : vector<128x1xf32>
    %17 = arith.divf %14, %16 : vector<128x1xf32>
    %18 = math.log %17 : vector<128x1xf32>
    %cst_7 = arith.constant 5.000000e-01 : f32
    %19 = vector.broadcast %cst_7 : f32 to vector<128x1xf32>
    %20 = arith.mulf %19, %18 : vector<128x1xf32>
    %21 = arith.divf %20, %8 : vector<128x1xf32>
    %22 = vector.broadcast %21 : vector<128x1xf32> to vector<128x128xf32>
    %23 = arith.mulf %22, %0 : vector<128x128xf32>
    %24 = arith.truncf %23 : vector<128x128xf32> to vector<128x128xbf16>
    %c0_8 = arith.constant 0 : index
    %c0_9 = arith.constant 0 : index
    %25 = vector.load %arg2[%c0_8, %c0_9] : memref<128x128xbf16, #tpu.memory_space<vmem>>, vector<128x128xbf16>
    tpu.vector_store %arg2[%c0_8, %c0_9], %24 {strides = array<i32>} : memref<128x128xbf16, #tpu.memory_space<vmem>>, vector<128x128xbf16>,
    return
  }
  func.func @transform_0(%arg0: i32) -> (i32, i32) {
    %c0_i32 = arith.constant 0 : i32
    %c0_i32_0 = arith.constant 0 : i32
    return %arg0, %c0_i32 : i32, i32
  }
  func.func @transform_1(%arg0: i32) -> (i32, i32) {
    %c0_i32 = arith.constant 0 : i32
    %c0_i32_0 = arith.constant 0 : i32
    return %arg0, %c0_i32 : i32, i32
  }
}

</mosaic_0001>

<llo_original>
// kernel: tpu_custom_call.1
$region0: #{tpu_custom_call.1}
  #allocation0 [shape = 'u32[]', space=smem, size = 0x4, offset = 0x4, fixed_abs, tag = 'smem constant byte address 0x4 - core index']
  #allocation1 [shape = 'u32[144,128]{1,0:T(1,128)}', space=vmem, size = 0x12000, scoped, tag = 'internal scratch']
  %s0 = inlined_call_operand.hbm [shape: f32[128,128], index: 0, kind: input, shape index: {}]
  %s1 = inlined_call_operand.hbm [shape: bf16[128,128], index: 1, kind: output, shape index: {}]
  %s2 = sld [smem:[#allocation0]]
  $region18: #{tpu_custom_call.1} parent=0
    _
  %s4 = ssub.s32 1, %s2
  %s5 = scalar_select 0, %s4, %s2
  $region1: #{tpu_custom_call.1} parent=0
    #allocation2 [shape = 'u8[65536]{0}', space=vmem, size = 0x10000, scoped, tag = 'input window, operand 0, single buffered']
    #allocation3 [shape = 's32[1]{0}', space=sflag, size = 0x4, scoped, tag = 'scoped memory for tpu_custom_call.1']
    #allocation4 [shape = 's32[1]{0}', space=sflag, size = 0x4, scoped, tag = 'scoped memory for tpu_custom_call.1']
    #allocation5 [shape = 'u8[32768]{0}', space=vmem, size = 0x8000, scoped, tag = 'output window, operand 0, single buffered']
    %6 = vsyncpa [#allocation3], 0
    %7 = vsyncpa [#allocation4], 0
    // Predicated region
    $region2: #{tpu_custom_call.1} parent=1 // pred_check
      _
    $region3: #{tpu_custom_call.1} parent=1 // pred_check_branch
      %9 = sbr.rel (0) target = $region5
    $region4: #{tpu_custom_call.1} parent=1 // pred_region
      %s11 = ssub.s32 2048, 2048
      %12 = vsyncadd [#allocation3], %s11
      %s13 = sshll.u32 [#allocation2], 4
      %s14 = int_to_ptr.vmem [resolvable:$true] %s13
      %19 = dma.hbm_to_vmem [thread:$0]  %s0, 2048, %s14, [#allocation3], 128, 128, 8
    $region5: #{tpu_custom_call.1} parent=1 // pred_fallthru
      _
    // Predicated region
    $region6: #{tpu_custom_call.1} parent=1 // pred_check
      _
    $region7: #{tpu_custom_call.1} parent=1 // pred_check_branch
      %21 = sbr.rel (0) target = $region9
    $region8: #{tpu_custom_call.1} parent=1 // pred_region
      %22 = dma.done [#allocation3], 2048
    $region9: #{tpu_custom_call.1} parent=1 // pred_fallthru
      _
    %v23 = vld [vmem:[#allocation2] sm:$0xff]
    %v24 = vld [vmem:[#allocation2 + $0x8] sm:$0xff]
    %v25 = vld [vmem:[#allocation2 + $0x10] sm:$0xff]
    %v26 = vld [vmem:[#allocation2 + $0x18] sm:$0xff]
    %v27 = vld [vmem:[#allocation2 + $0x20] sm:$0xff]
    %v28 = vld [vmem:[#allocation2 + $0x28] sm:$0xff]
    %v29 = vld [vmem:[#allocation2 + $0x30] sm:$0xff]
    %v30 = vld [vmem:[#allocation2 + $0x38] sm:$0xff]
    %v31 = vld [vmem:[#allocation2 + $0x40] sm:$0xff]
    %v32 = vld [vmem:[#allocation2 + $0x48] sm:$0xff]
    %v33 = vld [vmem:[#allocation2 + $0x50] sm:$0xff]
    %v34 = vld [vmem:[#allocation2 + $0x58] sm:$0xff]
    %v35 = vld [vmem:[#allocation2 + $0x60] sm:$0xff]
    %v36 = vld [vmem:[#allocation2 + $0x68] sm:$0xff]
    %v37 = vld [vmem:[#allocation2 + $0x70] sm:$0xff]
    %v38 = vld [vmem:[#allocation2 + $0x78] sm:$0xff]
    %v39 = vmul.f32 %v23, %v23
    %v40 = vmul.f32 %v24, %v24
    %v41 = vmul.f32 %v25, %v25
    %v42 = vmul.f32 %v26, %v26
    %v43 = vmul.f32 %v27, %v27
    %v44 = vmul.f32 %v28, %v28
    %v45 = vmul.f32 %v29, %v29
    %v46 = vmul.f32 %v30, %v30
    %v47 = vmul.f32 %v31, %v31
    %v48 = vmul.f32 %v32, %v32
    %v49 = vmul.f32 %v33, %v33
    %v50 = vmul.f32 %v34, %v34
    %v51 = vmul.f32 %v35, %v35
    %v52 = vmul.f32 %v36, %v36
    %v53 = vmul.f32 %v37, %v37
    %v54 = vmul.f32 %v38, %v38
    %55 = vadd.xlane.f32.xlu0 %v39
    %v56 = vpop.xlane.xlu0 %55
    %57 = vadd.xlane.f32.xlu0 %v40
    %v58 = vpop.xlane.xlu0 %57
    %59 = vadd.xlane.f32.xlu0 %v41
    %v60 = vpop.xlane.xlu0 %59
    %61 = vadd.xlane.f32.xlu0 %v42
    %v62 = vpop.xlane.xlu0 %61
    %63 = vadd.xlane.f32.xlu0 %v43
    %v64 = vpop.xlane.xlu0 %63
    %65 = vadd.xlane.f32.xlu0 %v44
    %v66 = vpop.xlane.xlu0 %65
    %67 = vadd.xlane.f32.xlu0 %v45
    %v68 = vpop.xlane.xlu0 %67
    %69 = vadd.xlane.f32.xlu0 %v46
    %v70 = vpop.xlane.xlu0 %69
    %71 = vadd.xlane.f32.xlu0 %v47
    %v72 = vpop.xlane.xlu0 %71
    %73 = vadd.xlane.f32.xlu0 %v48
    %v74 = vpop.xlane.xlu0 %73
    %75 = vadd.xlane.f32.xlu0 %v49
    %v76 = vpop.xlane.xlu0 %75
    %77 = vadd.xlane.f32.xlu0 %v50
    %v78 = vpop.xlane.xlu0 %77
    %79 = vadd.xlane.f32.xlu0 %v51
    %v80 = vpop.xlane.xlu0 %79
    %81 = vadd.xlane.f32.xlu0 %v52
    %v82 = vpop.xlane.xlu0 %81
    %83 = vadd.xlane.f32.xlu0 %v53
    %v84 = vpop.xlane.xlu0 %83
    %85 = vadd.xlane.f32.xlu0 %v54
    %v86 = vpop.xlane.xlu0 %85
    %v87 = vmax.f32 %v56, 1e-30
    %v88 = vmax.f32 %v58, 1e-30
    %v89 = vmax.f32 %v60, 1e-30
    %v90 = vmax.f32 %v62, 1e-30
    %v91 = vmax.f32 %v64, 1e-30
    %v92 = vmax.f32 %v66, 1e-30
    %v93 = vmax.f32 %v68, 1e-30
    %v94 = vmax.f32 %v70, 1e-30
    %v95 = vmax.f32 %v72, 1e-30
    %v96 = vmax.f32 %v74, 1e-30
    %v97 = vmax.f32 %v76, 1e-30
    %v98 = vmax.f32 %v78, 1e-30
    %v99 = vmax.f32 %v80, 1e-30
    %v100 = vmax.f32 %v82, 1e-30
    %v101 = vmax.f32 %v84, 1e-30
    %v102 = vmax.f32 %v86, 1e-30
    %v103 = vrsqrt.pop %v87
    %v104 = vmul.f32 %v87, %v103
    %vm105 = vcmp.eq.f32.partialorder %v87, inf
    %v106 = vsel %vm105, %v87, %v104
    %vm107 = vcmp.eq.f32.partialorder %v87, 0.0
    %v108 = vand.u32 %v87, 2147483648
    %v109 = vsel %vm107, %v108, %v106
    %v110 = vrsqrt.pop %v88
    %v111 = vmul.f32 %v88, %v110
    %vm112 = vcmp.eq.f32.partialorder %v88, inf
    %v113 = vsel %vm112, %v88, %v111
    %vm114 = vcmp.eq.f32.partialorder %v88, 0.0
    %v115 = vand.u32 %v88, 2147483648
    %v116 = vsel %vm114, %v115, %v113
    %v117 = vrsqrt.pop %v89
    %v118 = vmul.f32 %v89, %v117
    %vm119 = vcmp.eq.f32.partialorder %v89, inf
    %v120 = vsel %vm119, %v89, %v118
    %vm121 = vcmp.eq.f32.partialorder %v89, 0.0
    %v122 = vand.u32 %v89, 2147483648
    %v123 = vsel %vm121, %v122, %v120
    %v124 = vrsqrt.pop %v90
    %v125 = vmul.f32 %v90, %v124
    %vm126 = vcmp.eq.f32.partialorder %v90, inf
    %v127 = vsel %vm126, %v90, %v125
    %vm128 = vcmp.eq.f32.partialorder %v90, 0.0
    %v129 = vand.u32 %v90, 2147483648
    %v130 = vsel %vm128, %v129, %v127
    %v131 = vrsqrt.pop %v91
    %v132 = vmul.f32 %v91, %v131
    %vm133 = vcmp.eq.f32.partialorder %v91, inf
    %v134 = vsel %vm133, %v91, %v132
    %vm135 = vcmp.eq.f32.partialorder %v91, 0.0
    %v136 = vand.u32 %v91, 2147483648
    %v137 = vsel %vm135, %v136, %v134
    %v138 = vrsqrt.pop %v92
    %v139 = vmul.f32 %v92, %v138
    %vm140 = vcmp.eq.f32.partialorder %v92, inf
    %v141 = vsel %vm140, %v92, %v139
    %vm142 = vcmp.eq.f32.partialorder %v92, 0.0
    %v143 = vand.u32 %v92, 2147483648
    %v144 = vsel %vm142, %v143, %v141
    %v145 = vrsqrt.pop %v93
    %v146 = vmul.f32 %v93, %v145
    %vm147 = vcmp.eq.f32.partialorder %v93, inf
    %v148 = vsel %vm147, %v93, %v146
    %vm149 = vcmp.eq.f32.partialorder %v93, 0.0
    %v150 = vand.u32 %v93, 2147483648
    %v151 = vsel %vm149, %v150, %v148
    %v152 = vrsqrt.pop %v94
    %v153 = vmul.f32 %v94, %v152
    %vm154 = vcmp.eq.f32.partialorder %v94, inf
    %v155 = vsel %vm154, %v94, %v153
    %vm156 = vcmp.eq.f32.partialorder %v94, 0.0
    %v157 = vand.u32 %v94, 2147483648
    %v158 = vsel %vm156, %v157, %v155
    %v159 = vrsqrt.pop %v95
    %v160 = vmul.f32 %v95, %v159
    %vm161 = vcmp.eq.f32.partialorder %v95, inf
    %v162 = vsel %vm161, %v95, %v160
    %vm163 = vcmp.eq.f32.partialorder %v95, 0.0
    %v164 = vand.u32 %v95, 2147483648
    %v165 = vsel %vm163, %v164, %v162
    %v166 = vrsqrt.pop %v96
    %v167 = vmul.f32 %v96, %v166
    %vm168 = vcmp.eq.f32.partialorder %v96, inf
    %v169 = vsel %vm168, %v96, %v167
    %vm170 = vcmp.eq.f32.partialorder %v96, 0.0
    %v171 = vand.u32 %v96, 2147483648
    %v172 = vsel %vm170, %v171, %v169
    %v173 = vrsqrt.pop %v97
    %v174 = vmul.f32 %v97, %v173
    %vm175 = vcmp.eq.f32.partialorder %v97, inf
    %v176 = vsel %vm175, %v97, %v174
    %vm177 = vcmp.eq.f32.partialorder %v97, 0.0
    %v178 = vand.u32 %v97, 2147483648
    %v179 = vsel %vm177, %v178, %v176
    %v180 = vrsqrt.pop %v98
    %v181 = vmul.f32 %v98, %v180
    %vm182 = vcmp.eq.f32.partialorder %v98, inf
    %v183 = vsel %vm182, %v98, %v181
    %vm184 = vcmp.eq.f32.partialorder %v98, 0.0
    %v185 = vand.u32 %v98, 2147483648
    %v186 = vsel %vm184, %v185, %v183
    %v187 = vrsqrt.pop %v99
    %v188 = vmul.f32 %v99, %v187
    %vm189 = vcmp.eq.f32.partialorder %v99, inf
    %v190 = vsel %vm189, %v99, %v188
    %vm191 = vcmp.eq.f32.partialorder %v99, 0.0
    %v192 = vand.u32 %v99, 2147483648
    %v193 = vsel %vm191, %v192, %v190
    %v194 = vrsqrt.pop %v100
    %v195 = vmul.f32 %v100, %v194
    %vm196 = vcmp.eq.f32.partialorder %v100, inf
    %v197 = vsel %vm196, %v100, %v195
    %vm198 = vcmp.eq.f32.partialorder %v100, 0.0
    %v199 = vand.u32 %v100, 2147483648
    %v200 = vsel %vm198, %v199, %v197
    %v201 = vrsqrt.pop %v101
    %v202 = vmul.f32 %v101, %v201
    %vm203 = vcmp.eq.f32.partialorder %v101, inf
    %v204 = vsel %vm203, %v101, %v202
    %vm205 = vcmp.eq.f32.partialorder %v101, 0.0
    %v206 = vand.u32 %v101, 2147483648
    %v207 = vsel %vm205, %v206, %v204
    %v208 = vrsqrt.pop %v102
    %v209 = vmul.f32 %v102, %v208
    %vm210 = vcmp.eq.f32.partialorder %v102, inf
    %v211 = vsel %vm210, %v102, %v209
    %vm212 = vcmp.eq.f32.partialorder %v102, 0.0
    %v213 = vand.u32 %v102, 2147483648
    %v214 = vsel %vm212, %v213, %v211
    %v215 = vmax.f32 %v109, -0.9999999
    %v216 = vmax.f32 %v116, -0.9999999
    %v217 = vmax.f32 %v123, -0.9999999
    %v218 = vmax.f32 %v130, -0.9999999
    %v219 = vmax.f32 %v137, -0.9999999
    %v220 = vmax.f32 %v144, -0.9999999
    %v221 = vmax.f32 %v151, -0.9999999
    %v222 = vmax.f32 %v158, -0.9999999
    %v223 = vmax.f32 %v165, -0.9999999
    %v224 = vmax.f32 %v172, -0.9999999
    %v225 = vmax.f32 %v179, -0.9999999
    %v226 = vmax.f32 %v186, -0.9999999
    %v227 = vmax.f32 %v193, -0.9999999
    %v228 = vmax.f32 %v200, -0.9999999
    %v229 = vmax.f32 %v207, -0.9999999
    %v230 = vmax.f32 %v214, -0.9999999
    %v231 = vmin.f32 %v215, 0.9999999
    %v232 = vmin.f32 %v216, 0.9999999
    %v233 = vmin.f32 %v217, 0.9999999
    %v234 = vmin.f32 %v218, 0.9999999
    %v235 = vmin.f32 %v219, 0.9999999
    %v236 = vmin.f32 %v220, 0.9999999
    %v237 = vmin.f32 %v221, 0.9999999
    %v238 = vmin.f32 %v222, 0.9999999
    %v239 = vmin.f32 %v223, 0.9999999
    %v240 = vmin.f32 %v224, 0.9999999
    %v241 = vmin.f32 %v225, 0.9999999
    %v242 = vmin.f32 %v226, 0.9999999
    %v243 = vmin.f32 %v227, 0.9999999
    %v244 = vmin.f32 %v228, 0.9999999
    %v245 = vmin.f32 %v229, 0.9999999
    %v246 = vmin.f32 %v230, 0.9999999
    %v247 = vadd.f32 %v231, 1.0
    %v248 = vadd.f32 %v232, 1.0
    %v249 = vadd.f32 %v233, 1.0
    %v250 = vadd.f32 %v234, 1.0
    %v251 = vadd.f32 %v235, 1.0
    %v252 = vadd.f32 %v236, 1.0
    %v253 = vadd.f32 %v237, 1.0
    %v254 = vadd.f32 %v238, 1.0
    %v255 = vadd.f32 %v239, 1.0
    %v256 = vadd.f32 %v240, 1.0
    %v257 = vadd.f32 %v241, 1.0
    %v258 = vadd.f32 %v242, 1.0
    %v259 = vadd.f32 %v243, 1.0
    %v260 = vadd.f32 %v244, 1.0
    %v261 = vadd.f32 %v245, 1.0
    %v262 = vadd.f32 %v246, 1.0
    %v263 = vsub.f32 1.0, %v231
    %v264 = vsub.f32 1.0, %v232
    %v265 = vsub.f32 1.0, %v233
    %v266 = vsub.f32 1.0, %v234
    %v267 = vsub.f32 1.0, %v235
    %v268 = vsub.f32 1.0, %v236
    %v269 = vsub.f32 1.0, %v237
    %v270 = vsub.f32 1.0, %v238
    %v271 = vsub.f32 1.0, %v239
    %v272 = vsub.f32 1.0, %v240
    %v273 = vsub.f32 1.0, %v241
    %v274 = vsub.f32 1.0, %v242
    %v275 = vsub.f32 1.0, %v243
    %v276 = vsub.f32 1.0, %v244
    %v277 = vsub.f32 1.0, %v245
    %v278 = vsub.f32 1.0, %v246
    %v279 = vrcp.pop %v263
    %v280 = vmul.f32 %v247, %v279
    %v281 = vrcp.pop %v264
    %v282 = vmul.f32 %v248, %v281
    %v283 = vrcp.pop %v265
    %v284 = vmul.f32 %v249, %v283
    %v285 = vrcp.pop %v266
    %v286 = vmul.f32 %v250, %v285
    %v287 = vrcp.pop %v267
    %v288 = vmul.f32 %v251, %v287
    %v289 = vrcp.pop %v268
    %v290 = vmul.f32 %v252, %v289
    %v291 = vrcp.pop %v269
    %v292 = vmul.f32 %v253, %v291
    %v293 = vrcp.pop %v270
    %v294 = vmul.f32 %v254, %v293
    %v295 = vrcp.pop %v271
    %v296 = vmul.f32 %v255, %v295
    %v297 = vrcp.pop %v272
    %v298 = vmul.f32 %v256, %v297
    %v299 = vrcp.pop %v273
    %v300 = vmul.f32 %v257, %v299
    %v301 = vrcp.pop %v274
    %v302 = vmul.f32 %v258, %v301
    %v303 = vrcp.pop %v275
    %v304 = vmul.f32 %v259, %v303
    %v305 = vrcp.pop %v276
    %v306 = vmul.f32 %v260, %v305
    %v307 = vrcp.pop %v277
    %v308 = vmul.f32 %v261, %v307
    %v309 = vrcp.pop %v278
    %v310 = vmul.f32 %v262, %v309
    %v311 = vlog2.pop %v280
    %v312 = vmul.f32 %v311, 0.6931472
    %v313 = vlog2.pop %v282
    %v314 = vmul.f32 %v313, 0.6931472
    %v315 = vlog2.pop %v284
    %v316 = vmul.f32 %v315, 0.6931472
    %v317 = vlog2.pop %v286
    %v318 = vmul.f32 %v317, 0.6931472
    %v319 = vlog2.pop %v288
    %v320 = vmul.f32 %v319, 0.6931472
    %v321 = vlog2.pop %v290
    %v322 = vmul.f32 %v321, 0.6931472
    %v323 = vlog2.pop %v292
    %v324 = vmul.f32 %v323, 0.6931472
    %v325 = vlog2.pop %v294
    %v326 = vmul.f32 %v325, 0.6931472
    %v327 = vlog2.pop %v296
    %v328 = vmul.f32 %v327, 0.6931472
    %v329 = vlog2.pop %v298
    %v330 = vmul.f32 %v329, 0.6931472
    %v331 = vlog2.pop %v300
    %v332 = vmul.f32 %v331, 0.6931472
    %v333 = vlog2.pop %v302
    %v334 = vmul.f32 %v333, 0.6931472
    %v335 = vlog2.pop %v304
    %v336 = vmul.f32 %v335, 0.6931472
    %v337 = vlog2.pop %v306
    %v338 = vmul.f32 %v337, 0.6931472
    %v339 = vlog2.pop %v308
    %v340 = vmul.f32 %v339, 0.6931472
    %v341 = vlog2.pop %v310
    %v342 = vmul.f32 %v341, 0.6931472
    %v343 = vmul.f32 %v312, 0.5
    %v344 = vmul.f32 %v314, 0.5
    %v345 = vmul.f32 %v316, 0.5
    %v346 = vmul.f32 %v318, 0.5
    %v347 = vmul.f32 %v320, 0.5
    %v348 = vmul.f32 %v322, 0.5
    %v349 = vmul.f32 %v324, 0.5
    %v350 = vmul.f32 %v326, 0.5
    %v351 = vmul.f32 %v328, 0.5
    %v352 = vmul.f32 %v330, 0.5
    %v353 = vmul.f32 %v332, 0.5
    %v354 = vmul.f32 %v334, 0.5
    %v355 = vmul.f32 %v336, 0.5
    %v356 = vmul.f32 %v338, 0.5
    %v357 = vmul.f32 %v340, 0.5
    %v358 = vmul.f32 %v342, 0.5
    %v359 = vrcp.pop %v109
    %v360 = vmul.f32 %v343, %v359
    %v361 = vrcp.pop %v116
    %v362 = vmul.f32 %v344, %v361
    %v363 = vrcp.pop %v123
    %v364 = vmul.f32 %v345, %v363
    %v365 = vrcp.pop %v130
    %v366 = vmul.f32 %v346, %v365
    %v367 = vrcp.pop %v137
    %v368 = vmul.f32 %v347, %v367
    %v369 = vrcp.pop %v144
    %v370 = vmul.f32 %v348, %v369
    %v371 = vrcp.pop %v151
    %v372 = vmul.f32 %v349, %v371
    %v373 = vrcp.pop %v158
    %v374 = vmul.f32 %v350, %v373
    %v375 = vrcp.pop %v165
    %v376 = vmul.f32 %v351, %v375
    %v377 = vrcp.pop %v172
    %v378 = vmul.f32 %v352, %v377
    %v379 = vrcp.pop %v179
    %v380 = vmul.f32 %v353, %v379
    %v381 = vrcp.pop %v186
    %v382 = vmul.f32 %v354, %v381
    %v383 = vrcp.pop %v193
    %v384 = vmul.f32 %v355, %v383
    %v385 = vrcp.pop %v200
    %v386 = vmul.f32 %v356, %v385
    %v387 = vrcp.pop %v207
    %v388 = vmul.f32 %v357, %v387
    %v389 = vrcp.pop %v214
    %v390 = vmul.f32 %v358, %v389
    %v391 = vmul.f32 %v360, %v23
    %v392 = vmul.f32 %v362, %v24
    %v393 = vmul.f32 %v364, %v25
    %v394 = vmul.f32 %v366, %v26
    %v395 = vmul.f32 %v368, %v27
    %v396 = vmul.f32 %v370, %v28
    %v397 = vmul.f32 %v372, %v29
    %v398 = vmul.f32 %v374, %v30
    %v399 = vmul.f32 %v376, %v31
    %v400 = vmul.f32 %v378, %v32
    %v401 = vmul.f32 %v380, %v33
    %v402 = vmul.f32 %v382, %v34
    %v403 = vmul.f32 %v384, %v35
    %v404 = vmul.f32 %v386, %v36
    %v405 = vmul.f32 %v388, %v37
    %v406 = vmul.f32 %v390, %v38
    %v407 = vpack.c.bf16 %v392, %v391
    %v408 = vpack.c.bf16 %v394, %v393
    %v409 = vpack.c.bf16 %v396, %v395
    %v410 = vpack.c.bf16 %v398, %v397
    %v411 = vpack.c.bf16 %v400, %v399
    %v412 = vpack.c.bf16 %v402, %v401
    %v413 = vpack.c.bf16 %v404, %v403
    %v414 = vpack.c.bf16 %v406, %v405
    %v423 = vunpack.c.l.b16 %v407
    %v424 = vunpack.c.h.b16 %v407
    %v425 = vunpack.c.l.b16 %v408
    %v426 = vunpack.c.h.b16 %v408
    %v427 = vunpack.c.l.b16 %v409
    %v428 = vunpack.c.h.b16 %v409
    %v429 = vunpack.c.l.b16 %v410
    %v430 = vunpack.c.h.b16 %v410
    %v431 = vunpack.c.l.b16 %v411
    %v432 = vunpack.c.h.b16 %v411
    %v433 = vunpack.c.l.b16 %v412
    %v434 = vunpack.c.h.b16 %v412
    %v435 = vunpack.c.l.b16 %v413
    %v436 = vunpack.c.h.b16 %v413
    %v437 = vunpack.c.l.b16 %v414
    %v438 = vunpack.c.h.b16 %v414
    %v439 = vpack.c.b16 %v423, %v423
    %v440 = vpack.c.b16 %v424, %v424
    %v441 = vpack.c.b16 %v425, %v425
    %v442 = vpack.c.b16 %v426, %v426
    %v443 = vpack.c.b16 %v427, %v427
    %v444 = vpack.c.b16 %v428, %v428
    %v445 = vpack.c.b16 %v429, %v429
    %v446 = vpack.c.b16 %v430, %v430
    %v447 = vpack.c.b16 %v431, %v431
    %v448 = vpack.c.b16 %v432, %v432
    %v449 = vpack.c.b16 %v433, %v433
    %v450 = vpack.c.b16 %v434, %v434
    %v451 = vpack.c.b16 %v435, %v435
    %v452 = vpack.c.b16 %v436, %v436
    %v453 = vpack.c.b16 %v437, %v437
    %v454 = vpack.c.b16 %v438, %v438
    %471 = vst [vmem:[#allocation5] sm:$0xf] %v439
    %472 = vst [vmem:[#allocation5 + $0x4] sm:$0xf] %v440
    %473 = vst [vmem:[#allocation5 + $0x8] sm:$0xf] %v441
    %474 = vst [vmem:[#allocation5 + $0xc] sm:$0xf] %v442
    %475 = vst [vmem:[#allocation5 + $0x10] sm:$0xf] %v443
    %476 = vst [vmem:[#allocation5 + $0x14] sm:$0xf] %v444
    %477 = vst [vmem:[#allocation5 + $0x18] sm:$0xf] %v445
    %478 = vst [vmem:[#allocation5 + $0x1c] sm:$0xf] %v446
    %479 = vst [vmem:[#allocation5 + $0x20] sm:$0xf] %v447
    %480 = vst [vmem:[#allocation5 + $0x24] sm:$0xf] %v448
    %481 = vst [vmem:[#allocation5 + $0x28] sm:$0xf] %v449
    %482 = vst [vmem:[#allocation5 + $0x2c] sm:$0xf] %v450
    %483 = vst [vmem:[#allocation5 + $0x30] sm:$0xf] %v451
    %484 = vst [vmem:[#allocation5 + $0x34] sm:$0xf] %v452
    %485 = vst [vmem:[#allocation5 + $0x38] sm:$0xf] %v453
    %486 = vst [vmem:[#allocation5 + $0x3c] sm:$0xf] %v454
    // Predicated region
    $region10: #{tpu_custom_call.1} parent=1 // pred_check
      _
    $region11: #{tpu_custom_call.1} parent=1 // pred_check_branch
      %488 = sbr.rel (0) target = $region13
    $region12: #{tpu_custom_call.1} parent=1 // pred_region
      %s490 = ssub.s32 1024, 1024
      %491 = vsyncadd [#allocation4], %s490
      %s492 = sshll.u32 [#allocation5], 4
      %s493 = int_to_ptr.vmem [resolvable:$true] %s492
      %498 = dma.vmem_to_hbm [thread:$0]  %s493, 1024, %s1, [#allocation4], 64, 64, 4
    $region13: #{tpu_custom_call.1} parent=1 // pred_fallthru
      _
    // Predicated region
    $region14: #{tpu_custom_call.1} parent=1 // pred_check
      _
    $region15: #{tpu_custom_call.1} parent=1 // pred_check_branch
      %500 = sbr.rel (0) target = $region17
    $region16: #{tpu_custom_call.1} parent=1 // pred_region
      %501 = dma.done [#allocation4], 1024
    $region17: #{tpu_custom_call.1} parent=1 // pred_fallthru
      _
    %502 = vsyncpa [#allocation3], 1
    %503 = vsyncpa [#allocation4], 1

</llo_original>
